<compile_context>
chip_gen: v7x
topology: tpu7x:2x2x1
jax: 0.10.0
libtpu: 0.0.40
codegen_flags: <defaults>
</compile_context>

<pallas_src>
import functools

import jax
import jax.numpy as jnp
from jax.experimental import pallas as pl
from jax.experimental.pallas import tpu as pltpu


HIDDEN_DIM = 256
LANES = 128  # packed-output lane width


def _value_mlp_kernel(x_ref, w1_ref, b1_ref, w2_ref, b2_ref, w3_ref, b3_ref, o_ref):
    # x tile: [TB, S] f32 -> bf16 for the MXU, accumulate in f32.
    x = x_ref[...].astype(jnp.bfloat16)
    h1 = jnp.dot(x, w1_ref[...], preferred_element_type=jnp.float32)      # [TB, H]
    h1 = jnp.maximum(h1 + b1_ref[...], 0.0)
    h2 = jnp.dot(h1.astype(jnp.bfloat16), w2_ref[...],
                 preferred_element_type=jnp.float32)                      # [TB, H]
    h2 = jnp.maximum(h2 + b2_ref[...], 0.0)

    # fc3 (H -> 1) as a VPU multiply + lane reduction against the [1, H] row
    # (MXU stays idle-free, no [H, 1] weight tile).  The batch tile is viewed
    # as (TB//128, 128, H) groups (layout-preserving split of the major axis),
    # so the reduction directly yields the lane-packed (TB//128, 128) value
    # tile: lane c of row r holds batch row r*128 + c of this tile.
    tb, hdim = h2.shape
    h2g = h2.reshape(tb // LANES, LANES, hdim)
    v = jnp.sum(h2g * w3_ref[...], axis=-1) + b3_ref[0, 0]                # [TB//128, 128]
    o_ref[...] = v[None].astype(o_ref.dtype)                              # [1, TB//128, 128]


def prepare_params(params):
    """One-time layout/dtype prep (NOT done per forward call).

    params follow the PyTorch convention: W is [out, in], b is [out].
    """
    return {
        "w1": params["w1"].T.astype(jnp.bfloat16),                  # [S, H] bf16
        "b1": params["b1"].reshape(1, -1).astype(jnp.float32),      # [1, H]
        "w2": params["w2"].T.astype(jnp.bfloat16),                  # [H, H] bf16
        "b2": params["b2"].reshape(1, -1).astype(jnp.float32),      # [1, H]
        "w3_row": params["w3"].reshape(1, -1).astype(jnp.float32),  # [1, H]
        "b3": params["b3"].reshape(1, 1).astype(jnp.float32),       # [1, 1] -> SMEM scalar
    }


def _round_up(x, m):
    return ((x + m - 1) // m) * m


def _choose_tile(batch, batch_tile):
    """Batch tile: multiple of 128 (packed-output lanes & f32 sublanes)."""
    batch_tile = _round_up(max(batch_tile, LANES), LANES)
    if batch <= LANES:
        return LANES
    if batch <= 2 * batch_tile:
        # >= 2 grid steps so both v7x TensorCores get work ("parallel" axis).
        return min(batch_tile, _round_up(pl.cdiv(batch, 2), LANES))
    return batch_tile


@functools.partial(jax.jit, static_argnames=("batch_tile",))
def value_network_forward(state, prepared, *, batch_tile=1024):
    """state: [B, state_dim] f32; prepared: output of prepare_params. Returns [B, 1] f32."""
    B, S = state.shape
    H = prepared["w1"].shape[1]

    TB = _choose_tile(B, batch_tile)
    if B < TB:
        # Only for tiny batches (< 128): keep every block within the array
        # extent.  Cost is negligible (< 8 KiB); larger batches are unpadded
        # and the ragged last tile is handled by Pallas partial-block masking.
        state = jnp.pad(state, ((0, TB - B), (0, 0)))
    num_tiles = pl.cdiv(state.shape[0], TB)

    const = lambda i: (0, 0)  # weights / biases: same block every grid step

    out = pl.pallas_call(
        _value_mlp_kernel,
        out_shape=jax.ShapeDtypeStruct((num_tiles, TB // LANES, LANES), jnp.float32),
        grid=(num_tiles,),
        in_specs=[
            pl.BlockSpec((TB, S), lambda i: (i, 0)),   # x tile
            pl.BlockSpec((S, H), const),               # w1 (bf16, resident)
            pl.BlockSpec((1, H), const),               # b1
            pl.BlockSpec((H, H), const),               # w2 (bf16, resident)
            pl.BlockSpec((1, H), const),               # b2
            pl.BlockSpec((1, H), const),               # w3 row (f32)
            pl.BlockSpec(memory_space=pltpu.MemorySpace.SMEM),  # b3 scalar
        ],
        out_specs=pl.BlockSpec((1, TB // LANES, LANES), lambda i: (i, 0, 0)),
        compiler_params=pltpu.CompilerParams(
            dimension_semantics=("parallel",),  # 2 TCs on v7x split batch tiles
        ),
    )(state, prepared["w1"], prepared["b1"], prepared["w2"], prepared["b2"],
      prepared["w3_row"], prepared["b3"])

    # Lane-packed (num_tiles, TB//128, 128) -> [B, 1]; tiny contiguous slice.
    return out.reshape(-1)[:B, None]


def init_params(key, state_dim, hidden_dim=HIDDEN_DIM):
    """Deterministic synthetic init (uniform, like torch Linear default scale)."""
    ks = jax.random.split(key, 6)

    def lin(kw, kb, fan_in, fan_out):
        bound = 1.0 / jnp.sqrt(fan_in)
        w = jax.random.uniform(kw, (fan_out, fan_in), jnp.float32, -bound, bound)
        b = jax.random.uniform(kb, (fan_out,), jnp.float32, -bound, bound)
        return w, b

    w1, b1 = lin(ks[0], ks[1], state_dim, hidden_dim)
    w2, b2 = lin(ks[2], ks[3], hidden_dim, hidden_dim)
    w3, b3 = lin(ks[4], ks[5], hidden_dim, 1)
    return {"w1": w1, "b1": b1, "w2": w2, "b2": b2, "w3": w3, "b3": b3}


def _reference_forward_f32(state, p):
    h1 = jnp.maximum(state @ p["w1"].T + p["b1"], 0.0)
    h2 = jnp.maximum(h1 @ p["w2"].T + p["b2"], 0.0)
    return h2 @ p["w3"].T + p["b3"]


def _reference_forward_mixed(state, prep):
    """Same mixed precision (bf16 operands, f32 accumulation) as the kernel."""
    x = state.astype(jnp.bfloat16)
    h1 = jnp.maximum(
        jnp.dot(x, prep["w1"], preferred_element_type=jnp.float32) + prep["b1"], 0.0)
    h2 = jnp.maximum(
        jnp.dot(h1.astype(jnp.bfloat16), prep["w2"],
                preferred_element_type=jnp.float32) + prep["b2"], 0.0)
    return jnp.sum(h2 * prep["w3_row"], axis=-1, keepdims=True) + prep["b3"]


if __name__ == "__main__":
    key = jax.random.PRNGKey(0)
    k_state, k_state2, k_params = jax.random.split(key, 3)

    state_dim = 16
    params = init_params(k_params, state_dim)
    prepared = prepare_params(params)  # one-time layout/dtype prep

    # Small single-tile case (B < 128 path).
    batch = 8
    state = jax.random.normal(k_state, (batch, state_dim), jnp.float32)
    out = jax.block_until_ready(value_network_forward(state, prepared))
    assert out.shape == (batch, 1), out.shape
    ref_mixed = _reference_forward_mixed(state, prepared)
    ref_f32 = _reference_forward_f32(state, params)
    assert jnp.allclose(out, ref_mixed, atol=1e-3, rtol=1e-3), "mismatch vs mixed-precision reference"
    assert jnp.allclose(out, ref_f32, atol=5e-2, rtol=5e-2), "mismatch vs f32 reference"

    # Multi-tile case with a ragged last tile (exercises the unpadded grid path
    # and the v7x two-tile split: B=384 -> TB=256 -> 2 grid steps).
    batch2 = 384
    state2 = jax.random.normal(k_state2, (batch2, state_dim), jnp.float32)
    out2 = jax.block_until_ready(value_network_forward(state2, prepared))
    assert out2.shape == (batch2, 1), out2.shape
    ref2 = _reference_forward_mixed(state2, prepared)
    assert jnp.allclose(out2, ref2, atol=1e-3, rtol=1e-3), "mismatch vs reference (tiled)"

    print("KERNEL_OK")
</pallas_src>

<mosaic_0001>
module attributes {stable_mosaic.version = 11 : i64} {
  func.func @_value_mlp_kernel(%arg0: i32, %arg1: memref<128x16xf32, #tpu.memory_space<vmem>>, %arg2: memref<16x256xbf16, #tpu.memory_space<vmem>>, %arg3: memref<1x256xf32, #tpu.memory_space<vmem>>, %arg4: memref<256x256xbf16, #tpu.memory_space<vmem>>, %arg5: memref<1x256xf32, #tpu.memory_space<vmem>>, %arg6: memref<1x256xf32, #tpu.memory_space<vmem>>, %arg7: memref<1x1xf32, #tpu.memory_space<smem>>, %arg8: memref<1x1x128xf32, #tpu.memory_space<vmem>>) attributes {dimension_semantics = [#tpu.dimension_semantics<parallel>], iteration_bounds = array<i64: 1>, scalar_prefetch = 0 : i64, scratch_operands = 0 : i64, tpu.core_type = #tpu.core_type<tc>, window_params = [{transform_indices = @transform_0, window_bounds = array<i64: 128, 16>}, {pipeline_mode = #tpu.pipeline_mode<synchronous>, transform_indices = @transform_1, window_bounds = array<i64: 16, 256>}, {pipeline_mode = #tpu.pipeline_mode<synchronous>, transform_indices = @transform_2, window_bounds = array<i64: 1, 256>}, {pipeline_mode = #tpu.pipeline_mode<synchronous>, transform_indices = @transform_3, window_bounds = array<i64: 256, 256>}, {pipeline_mode = #tpu.pipeline_mode<synchronous>, transform_indices = @transform_4, window_bounds = array<i64: 1, 256>}, {pipeline_mode = #tpu.pipeline_mode<synchronous>, transform_indices = @transform_5, window_bounds = array<i64: 1, 256>}, {transform_indices = @transform_6, window_bounds = array<i64: 1, 1>}, {transform_indices = @transform_7, window_bounds = array<i64: 1, 1, 128>}]} {
    %c0 = arith.constant 0 : index
    %c0_0 = arith.constant 0 : index
    %0 = vector.load %arg1[%c0, %c0_0] : memref<128x16xf32, #tpu.memory_space<vmem>>, vector<128x16xf32>
    %1 = arith.truncf %0 : vector<128x16xf32> to vector<128x16xbf16>
    %c0_1 = arith.constant 0 : index
    %c0_2 = arith.constant 0 : index
    %2 = vector.load %arg2[%c0_1, %c0_2] : memref<16x256xbf16, #tpu.memory_space<vmem>>, vector<16x256xbf16>
    %cst = arith.constant dense<0.000000e+00> : vector<128x256xf32>
    %3 = tpu.matmul %1, %2, %cst {dimension_numbers = #tpu.dot_dimension_numbers<[1], [0], [0], [1], [0, 0, 1, 1], [], []>} : vector<128x16xbf16>, vector<16x256xbf16>, vector<128x256xf32> -> vector<128x256xf32>
    %c0_3 = arith.constant 0 : index
    %c0_4 = arith.constant 0 : index
    %4 = vector.load %arg3[%c0_3, %c0_4] : memref<1x256xf32, #tpu.memory_space<vmem>>, vector<1x256xf32>
    %5 = vector.broadcast %4 : vector<1x256xf32> to vector<128x256xf32>
    %6 = arith.addf %3, %5 : vector<128x256xf32>
    %cst_5 = arith.constant 0.000000e+00 : f32
    %7 = vector.broadcast %cst_5 : f32 to vector<128x256xf32>
    %8 = arith.maximumf %6, %7 : vector<128x256xf32>
    %9 = arith.truncf %8 : vector<128x256xf32> to vector<128x256xbf16>
    %c0_6 = arith.constant 0 : index
    %c0_7 = arith.constant 0 : index
    %10 = vector.load %arg4[%c0_6, %c0_7] : memref<256x256xbf16, #tpu.memory_space<vmem>>, vector<256x256xbf16>
    %cst_8 = arith.constant dense<0.000000e+00> : vector<128x256xf32>
    %11 = tpu.matmul %9, %10, %cst_8 {dimension_numbers = #tpu.dot_dimension_numbers<[1], [0], [0], [1], [0, 0, 1, 1], [], []>} : vector<128x256xbf16>, vector<256x256xbf16>, vector<128x256xf32> -> vector<128x256xf32>
    %c0_9 = arith.constant 0 : index
    %c0_10 = arith.constant 0 : index
    %12 = vector.load %arg5[%c0_9, %c0_10] : memref<1x256xf32, #tpu.memory_space<vmem>>, vector<1x256xf32>
    %13 = vector.broadcast %12 : vector<1x256xf32> to vector<128x256xf32>
    %14 = arith.addf %11, %13 : vector<128x256xf32>
    %cst_11 = arith.constant 0.000000e+00 : f32
    %15 = vector.broadcast %cst_11 : f32 to vector<128x256xf32>
    %16 = arith.maximumf %14, %15 : vector<128x256xf32>
    %17 = vector.shape_cast %16 : vector<128x256xf32> to vector<1x128x256xf32>
    %c0_12 = arith.constant 0 : index
    %c0_13 = arith.constant 0 : index
    %18 = vector.load %arg6[%c0_12, %c0_13] : memref<1x256xf32, #tpu.memory_space<vmem>>, vector<1x256xf32>
    %19 = vector.shape_cast %18 : vector<1x256xf32> to vector<1x1x256xf32>
    %20 = vector.broadcast %19 : vector<1x1x256xf32> to vector<1x128x256xf32>
    %21 = arith.mulf %17, %20 : vector<1x128x256xf32>
    %cst_14 = arith.constant dense<0.000000e+00> : vector<1x128xf32>
    %22 = vector.multi_reduction <add>, %21, %cst_14 [2] : vector<1x128x256xf32> to vector<1x128xf32>
    %c0_15 = arith.constant 0 : index
    %c0_16 = arith.constant 0 : index
    %23 = memref.load %arg7[%c0_15, %c0_16] : memref<1x1xf32, #tpu.memory_space<smem>>
    %24 = vector.broadcast %23 : f32 to vector<1x128xf32>
    %25 = arith.addf %22, %24 : vector<1x128xf32>
    %26 = vector.shape_cast %25 : vector<1x128xf32> to vector<1x1x128xf32>
    %c0_17 = arith.constant 0 : index
    %c0_18 = arith.constant 0 : index
    %c0_19 = arith.constant 0 : index
    %27 = vector.load %arg8[%c0_17, %c0_18, %c0_19] : memref<1x1x128xf32, #tpu.memory_space<vmem>>, vector<1x1x128xf32>
    tpu.vector_store %arg8[%c0_17, %c0_18, %c0_19], %26 {strides = array<i32>} : memref<1x1x128xf32, #tpu.memory_space<vmem>>, vector<1x1x128xf32>,
    return
  }
  func.func @transform_0(%arg0: i32) -> (i32, i32) {
    %c0_i32 = arith.constant 0 : i32
    %c0_i32_0 = arith.constant 0 : i32
    return %arg0, %c0_i32 : i32, i32
  }
  func.func @transform_1(%arg0: i32) -> (i32, i32) {
    %c0_i32 = arith.constant 0 : i32
    %c0_i32_0 = arith.constant 0 : i32
    %c0_i32_1 = arith.constant 0 : i32
    return %c0_i32, %c0_i32_0 : i32, i32
  }
  func.func @transform_2(%arg0: i32) -> (i32, i32) {
    %c0_i32 = arith.constant 0 : i32
    %c0_i32_0 = arith.constant 0 : i32
    %c0_i32_1 = arith.constant 0 : i32
    return %c0_i32, %c0_i32_0 : i32, i32
  }
  func.func @transform_3(%arg0: i32) -> (i32, i32) {
    %c0_i32 = arith.constant 0 : i32
    %c0_i32_0 = arith.constant 0 : i32
    %c0_i32_1 = arith.constant 0 : i32
    return %c0_i32, %c0_i32_0 : i32, i32
  }
  func.func @transform_4(%arg0: i32) -> (i32, i32) {
    %c0_i32 = arith.constant 0 : i32
    %c0_i32_0 = arith.constant 0 : i32
    %c0_i32_1 = arith.constant 0 : i32
    return %c0_i32, %c0_i32_0 : i32, i32
  }
  func.func @transform_5(%arg0: i32) -> (i32, i32) {
    %c0_i32 = arith.constant 0 : i32
    %c0_i32_0 = arith.constant 0 : i32
    %c0_i32_1 = arith.constant 0 : i32
    return %c0_i32, %c0_i32_0 : i32, i32
  }
  func.func @transform_6(%arg0: i32) -> (i32, i32) {
    %c0_i32 = arith.constant 0 : i32
    %c0_i32_0 = arith.constant 0 : i32
    %c0_i32_1 = arith.constant 0 : i32
    return %c0_i32, %c0_i32_0 : i32, i32
  }
  func.func @transform_7(%arg0: i32) -> (i32, i32, i32) {
    %c0_i32 = arith.constant 0 : i32
    %c0_i32_0 = arith.constant 0 : i32
    %c0_i32_1 = arith.constant 0 : i32
    return %arg0, %c0_i32, %c0_i32_0 : i32, i32, i32
  }
}

</mosaic_0001>

<llo_original>
// kernel: value_network_forward.1
$region0: #{value_network_forward.1}
  #allocation0 [shape = 'u32[]', space=smem, size = 0x4, offset = 0x4, fixed_abs, tag = 'smem constant byte address 0x4 - core index']
  #allocation1 [shape = 'u32[144,128]{1,0:T(1,128)}', space=vmem, size = 0x12000, scoped, tag = 'internal scratch']
  #allocation2 [shape = 'f32[1,1]{1,0:T(1,128)S(6)}', space=smem, size = 0x200, scoped, tag = 'scoped memory for value_network_forward.1']
  %s0 = inlined_call_operand.vmem [shape: f32[128,16], index: 0, kind: input, shape index: {}]
  %s1 = inlined_call_operand.vmem [shape: bf16[16,256], index: 1, kind: input, shape index: {}]
  %s2 = inlined_call_operand.vmem [shape: f32[1,256], index: 2, kind: input, shape index: {}]
  %s3 = inlined_call_operand.hbm [shape: bf16[256,256], index: 3, kind: input, shape index: {}]
  %s4 = inlined_call_operand.vmem [shape: f32[1,256], index: 4, kind: input, shape index: {}]
  %s5 = inlined_call_operand.vmem [shape: f32[1,256], index: 5, kind: input, shape index: {}]
  %s6 = inlined_call_operand.<no memory space> [shape: f32[1,1], index: 6, kind: input, shape index: {}]
  %s7 = inlined_call_operand.vmem [shape: f32[1,1,128], index: 7, kind: output, shape index: {}]
  %s8 = sld [smem:[#allocation0]]
  $region42: #{value_network_forward.1} parent=0
    _
  %s10 = ssub.s32 1, %s8
  %s11 = scalar_select 0, %s10, %s8
  %12 = sst [smem:[#allocation2]] %s6
  $region1: #{value_network_forward.1} parent=0
    #allocation3 [shape = 'u8[131072]{0}', space=vmem, size = 0x20000, scoped, tag = 'input window, operand 3, single buffered']
    #allocation4 [shape = 's32[1]{0}', space=sflag, size = 0x4, scoped, tag = 'scoped memory for value_network_forward.1']
    %13 = vsyncpa [#allocation4], 0
    // Predicated region
    $region2: #{value_network_forward.1} parent=1 // pred_check
      _
    $region3: #{value_network_forward.1} parent=1 // pred_check_branch
      %15 = sbr.rel (0) target = $region5
    $region4: #{value_network_forward.1} parent=1 // pred_region
      _
    $region5: #{value_network_forward.1} parent=1 // pred_fallthru
      _
    // Predicated region
    $region6: #{value_network_forward.1} parent=1 // pred_check
      _
    $region7: #{value_network_forward.1} parent=1 // pred_check_branch
      %17 = sbr.rel (0) target = $region9
    $region8: #{value_network_forward.1} parent=1 // pred_region
      _
    $region9: #{value_network_forward.1} parent=1 // pred_fallthru
      _
    // Predicated region
    $region10: #{value_network_forward.1} parent=1 // pred_check
      _
    $region11: #{value_network_forward.1} parent=1 // pred_check_branch
      %19 = sbr.rel (0) target = $region13
    $region12: #{value_network_forward.1} parent=1 // pred_region
      _
    $region13: #{value_network_forward.1} parent=1 // pred_fallthru
      _
    // Predicated region
    $region14: #{value_network_forward.1} parent=1 // pred_check
      _
    $region15: #{value_network_forward.1} parent=1 // pred_check_branch
      %21 = sbr.rel (0) target = $region17
    $region16: #{value_network_forward.1} parent=1 // pred_region
      %s23 = ssub.s32 4096, 4096
      %24 = vsyncadd [#allocation4], %s23
      %s25 = sshll.u32 [#allocation3], 4
      %s26 = int_to_ptr.vmem [resolvable:$true] %s25
      %31 = dma.hbm_to_vmem [thread:$0]  %s3, 4096, %s26, [#allocation4], 128, 128, 8
    $region17: #{value_network_forward.1} parent=1 // pred_fallthru
      _
    // Predicated region
    $region18: #{value_network_forward.1} parent=1 // pred_check
      _
    $region19: #{value_network_forward.1} parent=1 // pred_check_branch
      %33 = sbr.rel (0) target = $region21
    $region20: #{value_network_forward.1} parent=1 // pred_region
      _
    $region21: #{value_network_forward.1} parent=1 // pred_fallthru
      _
    // Predicated region
    $region22: #{value_network_forward.1} parent=1 // pred_check
      _
    $region23: #{value_network_forward.1} parent=1 // pred_check_branch
      %35 = sbr.rel (0) target = $region25
    $region24: #{value_network_forward.1} parent=1 // pred_region
      _
    $region25: #{value_network_forward.1} parent=1 // pred_fallthru
      _
    // Predicated region
    $region26: #{value_network_forward.1} parent=1 // pred_check
      _
    $region27: #{value_network_forward.1} parent=1 // pred_check_branch
      %37 = sbr.rel (0) target = $region29
    $region28: #{value_network_forward.1} parent=1 // pred_region
      _
    $region29: #{value_network_forward.1} parent=1 // pred_fallthru
      _
    // Predicated region
    $region30: #{value_network_forward.1} parent=1 // pred_check
      _
    $region31: #{value_network_forward.1} parent=1 // pred_check_branch
      %39 = sbr.rel (0) target = $region33
    $region32: #{value_network_forward.1} parent=1 // pred_region
      %40 = dma.done [#allocation4], 4096
    $region33: #{value_network_forward.1} parent=1 // pred_fallthru
      _
    %v42 = vld [vmem:[%s0] sm:$0xff]
    %v43 = vld [vmem:[%s0 + $0x8] sm:$0xff]
    %v44 = vld [vmem:[%s0 + $0x10] sm:$0xff]
    %v45 = vld [vmem:[%s0 + $0x18] sm:$0xff]
    %v46 = vld [vmem:[%s0 + $0x20] sm:$0xff]
    %v47 = vld [vmem:[%s0 + $0x28] sm:$0xff]
    %v48 = vld [vmem:[%s0 + $0x30] sm:$0xff]
    %v49 = vld [vmem:[%s0 + $0x38] sm:$0xff]
    %v50 = vld [vmem:[%s0 + $0x40] sm:$0xff]
    %v51 = vld [vmem:[%s0 + $0x48] sm:$0xff]
    %v52 = vld [vmem:[%s0 + $0x50] sm:$0xff]
    %v53 = vld [vmem:[%s0 + $0x58] sm:$0xff]
    %v54 = vld [vmem:[%s0 + $0x60] sm:$0xff]
    %v55 = vld [vmem:[%s0 + $0x68] sm:$0xff]
    %v56 = vld [vmem:[%s0 + $0x70] sm:$0xff]
    %v57 = vld [vmem:[%s0 + $0x78] sm:$0xff]
    %v58 = vpack.c.bf16 %v43, %v42
    %v59 = vpack.c.bf16 %v45, %v44
    %v60 = vpack.c.bf16 %v47, %v46
    %v61 = vpack.c.bf16 %v49, %v48
    %v62 = vpack.c.bf16 %v51, %v50
    %v63 = vpack.c.bf16 %v53, %v52
    %v64 = vpack.c.bf16 %v55, %v54
    %v65 = vpack.c.bf16 %v57, %v56
    %v66 = vld [vmem:[%s1] sm:$0xff]
    %v67 = vld [vmem:[%s1 + $0x8] sm:$0xff]
    %v68 = vld [vmem:[%s2] sm:$0x3]
    %v70 = vlaneseq
    %v71 = vshrl.u32 %v70, 7
    %v72 = vsub.s32 0, %v71
    %v73 = vrot.slane %v68, %v72
    %v74 = vlaneseq
    %v75 = vshrl.u32 %v74, 7
    %v76 = vsub.s32 1, %v75
    %v77 = vrot.slane %v68, %v76
    %v82 = vunpack.c.l.b16 %v66
    %v83 = vunpack.c.h.b16 %v66
    %v84 = vunpack.c.l.b16 %v67
    %v85 = vunpack.c.h.b16 %v67
    %v86 = vpack.c.b16 %v84, %v82
    %v87 = vpack.c.b16 %v85, %v83
    %vm90 = vcmask 130048
    %v92 = vsel %vm90, %v58, 0
    %v95 = vsel %vm90, %v59, 0
    %v98 = vsel %vm90, %v60, 0
    %v101 = vsel %vm90, %v61, 0
    %v104 = vsel %vm90, %v62, 0
    %v107 = vsel %vm90, %v63, 0
    %v110 = vsel %vm90, %v64, 0
    %v113 = vsel %vm90, %v65, 0
    %115 = vmatprep.subr.bf16.mxu0 %v87
    %116 = vmatpush1.bf16.msra.mxu0 %v86
    %117 = vmatprep.subr.bf16.mxu0 0
    %118 = vmatpush1.bf16.msra.mxu0 0
    %119 = vmatprep.subr.bf16.mxu0 0
    %120 = vmatpush1.bf16.msra.mxu0 0
    %121 = vmatprep.subr.bf16.mxu0 0
    %122 = vmatpush1.bf16.msra.mxu0 0
    %123 = vmatprep.subr.bf16.mxu0 0
    %124 = vmatpush1.bf16.msra.mxu0 0
    %125 = vmatprep.subr.bf16.mxu0 0
    %126 = vmatpush1.bf16.msra.mxu0 0
    %127 = vmatprep.subr.bf16.mxu0 0
    %128 = vmatpush1.bf16.msra.mxu0 0
    %129 = vmatprep.subr.bf16.mxu0 0
    %130 = vmatpush1.bf16.msra.mxu0 0
    %131 = vmatprep.subr.bf16.mxu0 0
    %132 = vmatpush1.bf16.msra.mxu0 0
    %133 = vmatprep.subr.bf16.mxu0 0
    %134 = vmatpush1.bf16.msra.mxu0 0
    %135 = vmatprep.subr.bf16.mxu0 0
    %136 = vmatpush1.bf16.msra.mxu0 0
    %137 = vmatprep.subr.bf16.mxu0 0
    %138 = vmatpush1.bf16.msra.mxu0 0
    %139 = vmatprep.subr.bf16.mxu0 0
    %140 = vmatpush1.bf16.msra.mxu0 0
    %141 = vmatprep.subr.bf16.mxu0 0
    %142 = vmatpush1.bf16.msra.mxu0 0
    %143 = vmatprep.subr.bf16.mxu0 0
    %144 = vmatpush1.bf16.msra.mxu0 0
    %145 = vmatprep.subr.bf16.mxu0 0
    %146 = vmatpush1.bf16.msra.mxu0 0
    %147 = vmatprep.mubr.bf16.mxu0 0
    %148 = vmatmul.mubr.bf16.gmra.mrb[0].mxu0 %v92
    %v149 = vpop.f32.mrb[0].mxu0
    %v150 = vadd.f32 %v73, %v149
    %v151 = vpop.f32.mrb[0].mxu0
    %v152 = vadd.f32 %v77, %v151
    %v153 = vpop.f32.mrb[0].mxu0
    %v154 = vadd.f32 %v73, %v153
    %v155 = vpop.f32.mrb[0].mxu0
    %v156 = vadd.f32 %v77, %v155
    %157 = vmatprep.mubr.bf16.mxu0 0
    %158 = vmatmul.mubr.bf16.gmra.mrb[0].mxu0 %v95
    %v159 = vpop.f32.mrb[0].mxu0
    %v160 = vadd.f32 %v73, %v159
    %v161 = vpop.f32.mrb[0].mxu0
    %v162 = vadd.f32 %v77, %v161
    %v163 = vpop.f32.mrb[0].mxu0
    %v164 = vadd.f32 %v73, %v163
    %v165 = vpop.f32.mrb[0].mxu0
    %v166 = vadd.f32 %v77, %v165
    %167 = vmatprep.mubr.bf16.mxu0 0
    %168 = vmatmul.mubr.bf16.gmra.mrb[0].mxu0 %v98
    %v169 = vpop.f32.mrb[0].mxu0
    %v170 = vadd.f32 %v73, %v169
    %v171 = vpop.f32.mrb[0].mxu0
    %v172 = vadd.f32 %v77, %v171
    %v173 = vpop.f32.mrb[0].mxu0
    %v174 = vadd.f32 %v73, %v173
    %v175 = vpop.f32.mrb[0].mxu0
    %v176 = vadd.f32 %v77, %v175
    %177 = vmatprep.mubr.bf16.mxu0 0
    %178 = vmatmul.mubr.bf16.gmra.mrb[0].mxu0 %v101
    %v179 = vpop.f32.mrb[0].mxu0
    %v180 = vadd.f32 %v73, %v179
    %v181 = vpop.f32.mrb[0].mxu0
    %v182 = vadd.f32 %v77, %v181
    %v183 = vpop.f32.mrb[0].mxu0
    %v184 = vadd.f32 %v73, %v183
    %v185 = vpop.f32.mrb[0].mxu0
    %v186 = vadd.f32 %v77, %v185
    %187 = vmatprep.mubr.bf16.mxu0 0
    %188 = vmatmul.mubr.bf16.gmra.mrb[0].mxu0 %v104
    %v189 = vpop.f32.mrb[0].mxu0
    %v190 = vadd.f32 %v73, %v189
    %v191 = vpop.f32.mrb[0].mxu0
    %v192 = vadd.f32 %v77, %v191
    %v193 = vpop.f32.mrb[0].mxu0
    %v194 = vadd.f32 %v73, %v193
    %v195 = vpop.f32.mrb[0].mxu0
    %v196 = vadd.f32 %v77, %v195
    %197 = vmatprep.mubr.bf16.mxu0 0
    %198 = vmatmul.mubr.bf16.gmra.mrb[0].mxu0 %v107
    %v199 = vpop.f32.mrb[0].mxu0
    %v200 = vadd.f32 %v73, %v199
    %v201 = vpop.f32.mrb[0].mxu0
    %v202 = vadd.f32 %v77, %v201
    %v203 = vpop.f32.mrb[0].mxu0
    %v204 = vadd.f32 %v73, %v203
    %v205 = vpop.f32.mrb[0].mxu0
    %v206 = vadd.f32 %v77, %v205
    %207 = vmatprep.mubr.bf16.mxu0 0
    %208 = vmatmul.mubr.bf16.gmra.mrb[0].mxu0 %v110
    %v209 = vpop.f32.mrb[0].mxu0
    %v210 = vadd.f32 %v73, %v209
    %v211 = vpop.f32.mrb[0].mxu0
    %v212 = vadd.f32 %v77, %v211
    %v213 = vpop.f32.mrb[0].mxu0
    %v214 = vadd.f32 %v73, %v213
    %v215 = vpop.f32.mrb[0].mxu0
    %v216 = vadd.f32 %v77, %v215
    %217 = vmatprep.mubr.bf16.mxu0 0
    %218 = vmatmul.mubr.bf16.gmra.mrb[0].mxu0 %v113
    %v219 = vpop.f32.mrb[0].mxu0
    %v220 = vadd.f32 %v73, %v219
    %v221 = vpop.f32.mrb[0].mxu0
    %v222 = vadd.f32 %v77, %v221
    %v223 = vpop.f32.mrb[0].mxu0
    %v224 = vadd.f32 %v73, %v223
    %v225 = vpop.f32.mrb[0].mxu0
    %v226 = vadd.f32 %v77, %v225
    %227 = vdwg.mxu0
    %v228 = vmax.f32 %v150, 0.0
    %v229 = vmax.f32 %v152, 0.0
    %v230 = vmax.f32 %v154, 0.0
    %v231 = vmax.f32 %v156, 0.0
    %v232 = vmax.f32 %v160, 0.0
    %v233 = vmax.f32 %v162, 0.0
    %v234 = vmax.f32 %v164, 0.0
    %v235 = vmax.f32 %v166, 0.0
    %v236 = vmax.f32 %v170, 0.0
    %v237 = vmax.f32 %v172, 0.0
    %v238 = vmax.f32 %v174, 0.0
    %v239 = vmax.f32 %v176, 0.0
    %v240 = vmax.f32 %v180, 0.0
    %v241 = vmax.f32 %v182, 0.0
    %v242 = vmax.f32 %v184, 0.0
    %v243 = vmax.f32 %v186, 0.0
    %v244 = vmax.f32 %v190, 0.0
    %v245 = vmax.f32 %v192, 0.0
    %v246 = vmax.f32 %v194, 0.0
    %v247 = vmax.f32 %v196, 0.0
    %v248 = vmax.f32 %v200, 0.0
    %v249 = vmax.f32 %v202, 0.0
    %v250 = vmax.f32 %v204, 0.0
    %v251 = vmax.f32 %v206, 0.0
    %v252 = vmax.f32 %v210, 0.0
    %v253 = vmax.f32 %v212, 0.0
    %v254 = vmax.f32 %v214, 0.0
    %v255 = vmax.f32 %v216, 0.0
    %v256 = vmax.f32 %v220, 0.0
    %v257 = vmax.f32 %v222, 0.0
    %v258 = vmax.f32 %v224, 0.0
    %v259 = vmax.f32 %v226, 0.0
    %v260 = vpack.c.bf16 %v230, %v228
    %v261 = vpack.c.bf16 %v231, %v229
    %v262 = vpack.c.bf16 %v234, %v232
    %v263 = vpack.c.bf16 %v235, %v233
    %v264 = vpack.c.bf16 %v238, %v236
    %v265 = vpack.c.bf16 %v239, %v237
    %v266 = vpack.c.bf16 %v242, %v240
    %v267 = vpack.c.bf16 %v243, %v241
    %v268 = vpack.c.bf16 %v246, %v244
    %v269 = vpack.c.bf16 %v247, %v245
    %v270 = vpack.c.bf16 %v250, %v248
    %v271 = vpack.c.bf16 %v251, %v249
    %v272 = vpack.c.bf16 %v254, %v252
    %v273 = vpack.c.bf16 %v255, %v253
    %v274 = vpack.c.bf16 %v258, %v256
    %v275 = vpack.c.bf16 %v259, %v257
    %v276 = vld [vmem:[#allocation3] sm:$0xff]
    %v277 = vld [vmem:[#allocation3 + $0x8] sm:$0xff]
    %v278 = vld [vmem:[#allocation3 + $0x10] sm:$0xff]
    %v279 = vld [vmem:[#allocation3 + $0x18] sm:$0xff]
    %v280 = vld [vmem:[#allocation3 + $0x20] sm:$0xff]
    %v281 = vld [vmem:[#allocation3 + $0x28] sm:$0xff]
    %v282 = vld [vmem:[#allocation3 + $0x30] sm:$0xff]
    %v283 = vld [vmem:[#allocation3 + $0x38] sm:$0xff]
    %v284 = vld [vmem:[#allocation3 + $0x40] sm:$0xff]
    %v285 = vld [vmem:[#allocation3 + $0x48] sm:$0xff]
    %v286 = vld [vmem:[#allocation3 + $0x50] sm:$0xff]
    %v287 = vld [vmem:[#allocation3 + $0x58] sm:$0xff]
    %v288 = vld [vmem:[#allocation3 + $0x60] sm:$0xff]
    %v289 = vld [vmem:[#allocation3 + $0x68] sm:$0xff]
    %v290 = vld [vmem:[#allocation3 + $0x70] sm:$0xff]
    %v291 = vld [vmem:[#allocation3 + $0x78] sm:$0xff]
    %v292 = vld [vmem:[#allocation3 + $0x80] sm:$0xff]
    %v293 = vld [vmem:[#allocation3 + $0x88] sm:$0xff]
    %v294 = vld [vmem:[#allocation3 + $0x90] sm:$0xff]
    %v295 = vld [vmem:[#allocation3 + $0x98] sm:$0xff]
    %v296 = vld [vmem:[#allocation3 + $0xa0] sm:$0xff]
    %v297 = vld [vmem:[#allocation3 + $0xa8] sm:$0xff]
    %v298 = vld [vmem:[#allocation3 + $0xb0] sm:$0xff]
    %v299 = vld [vmem:[#allocation3 + $0xb8] sm:$0xff]
    %v300 = vld [vmem:[#allocation3 + $0xc0] sm:$0xff]
    %v301 = vld [vmem:[#allocation3 + $0xc8] sm:$0xff]
    %v302 = vld [vmem:[#allocation3 + $0xd0] sm:$0xff]
    %v303 = vld [vmem:[#allocation3 + $0xd8] sm:$0xff]
    %v304 = vld [vmem:[#allocation3 + $0xe0] sm:$0xff]
    %v305 = vld [vmem:[#allocation3 + $0xe8] sm:$0xff]
    %v306 = vld [vmem:[#allocation3 + $0xf0] sm:$0xff]
    %v307 = vld [vmem:[#allocation3 + $0xf8] sm:$0xff]
    %v308 = vld [vmem:[%s4] sm:$0x3]
    %v310 = vlaneseq
    %v311 = vshrl.u32 %v310, 7
    %v312 = vsub.s32 0, %v311
    %v313 = vrot.slane %v308, %v312
    %v314 = vlaneseq
    %v315 = vshrl.u32 %v314, 7
    %v316 = vsub.s32 1, %v315
    %v317 = vrot.slane %v308, %v316
    %v352 = vunpack.c.l.b16 %v276
    %v353 = vunpack.c.h.b16 %v276
    %v354 = vunpack.c.l.b16 %v277
    %v355 = vunpack.c.h.b16 %v277
    %v356 = vunpack.c.l.b16 %v278
    %v357 = vunpack.c.h.b16 %v278
    %v358 = vunpack.c.l.b16 %v279
    %v359 = vunpack.c.h.b16 %v279
    %v360 = vunpack.c.l.b16 %v280
    %v361 = vunpack.c.h.b16 %v280
    %v362 = vunpack.c.l.b16 %v281
    %v363 = vunpack.c.h.b16 %v281
    %v364 = vunpack.c.l.b16 %v282
    %v365 = vunpack.c.h.b16 %v282
    %v366 = vunpack.c.l.b16 %v283
    %v367 = vunpack.c.h.b16 %v283
    %v368 = vunpack.c.l.b16 %v284
    %v369 = vunpack.c.h.b16 %v284
    %v370 = vunpack.c.l.b16 %v285
    %v371 = vunpack.c.h.b16 %v285
    %v372 = vunpack.c.l.b16 %v286
    %v373 = vunpack.c.h.b16 %v286
    %v374 = vunpack.c.l.b16 %v287
    %v375 = vunpack.c.h.b16 %v287
    %v376 = vunpack.c.l.b16 %v288
    %v377 = vunpack.c.h.b16 %v288
    %v378 = vunpack.c.l.b16 %v289
    %v379 = vunpack.c.h.b16 %v289
    %v380 = vunpack.c.l.b16 %v290
    %v381 = vunpack.c.h.b16 %v290
    %v382 = vunpack.c.l.b16 %v291
    %v383 = vunpack.c.h.b16 %v291
    %v384 = vunpack.c.l.b16 %v292
    %v385 = vunpack.c.h.b16 %v292
    %v386 = vunpack.c.l.b16 %v293
    %v387 = vunpack.c.h.b16 %v293
    %v388 = vunpack.c.l.b16 %v294
    %v389 = vunpack.c.h.b16 %v294
    %v390 = vunpack.c.l.b16 %v295
    %v391 = vunpack.c.h.b16 %v295
    %v392 = vunpack.c.l.b16 %v296
    %v393 = vunpack.c.h.b16 %v296
    %v394 = vunpack.c.l.b16 %v297
    %v395 = vunpack.c.h.b16 %v297
    %v396 = vunpack.c.l.b16 %v298
    %v397 = vunpack.c.h.b16 %v298
    %v398 = vunpack.c.l.b16 %v299
    %v399 = vunpack.c.h.b16 %v299
    %v400 = vunpack.c.l.b16 %v300
    %v401 = vunpack.c.h.b16 %v300
    %v402 = vunpack.c.l.b16 %v301
    %v403 = vunpack.c.h.b16 %v301
    %v404 = vunpack.c.l.b16 %v302
    %v405 = vunpack.c.h.b16 %v302
    %v406 = vunpack.c.l.b16 %v303
    %v407 = vunpack.c.h.b16 %v303
    %v408 = vunpack.c.l.b16 %v304
    %v409 = vunpack.c.h.b16 %v304
    %v410 = vunpack.c.l.b16 %v305
    %v411 = vunpack.c.h.b16 %v305
    %v412 = vunpack.c.l.b16 %v306
    %v413 = vunpack.c.h.b16 %v306
    %v414 = vunpack.c.l.b16 %v307
    %v415 = vunpack.c.h.b16 %v307
    %v416 = vpack.c.b16 %v354, %v352
    %v417 = vpack.c.b16 %v355, %v353
    %v418 = vpack.c.b16 %v358, %v356
    %v419 = vpack.c.b16 %v359, %v357
    %v420 = vpack.c.b16 %v362, %v360
    %v421 = vpack.c.b16 %v363, %v361
    %v422 = vpack.c.b16 %v366, %v364
    %v423 = vpack.c.b16 %v367, %v365
    %v424 = vpack.c.b16 %v370, %v368
    %v425 = vpack.c.b16 %v371, %v369
    %v426 = vpack.c.b16 %v374, %v372
    %v427 = vpack.c.b16 %v375, %v373
    %v428 = vpack.c.b16 %v378, %v376
    %v429 = vpack.c.b16 %v379, %v377
    %v430 = vpack.c.b16 %v382, %v380
    %v431 = vpack.c.b16 %v383, %v381
    %v432 = vpack.c.b16 %v386, %v384
    %v433 = vpack.c.b16 %v387, %v385
    %v434 = vpack.c.b16 %v390, %v388
    %v435 = vpack.c.b16 %v391, %v389
    %v436 = vpack.c.b16 %v394, %v392
    %v437 = vpack.c.b16 %v395, %v393
    %v438 = vpack.c.b16 %v398, %v396
    %v439 = vpack.c.b16 %v399, %v397
    %v440 = vpack.c.b16 %v402, %v400
    %v441 = vpack.c.b16 %v403, %v401
    %v442 = vpack.c.b16 %v406, %v404
    %v443 = vpack.c.b16 %v407, %v405
    %v444 = vpack.c.b16 %v410, %v408
    %v445 = vpack.c.b16 %v411, %v409
    %v446 = vpack.c.b16 %v414, %v412
    %v447 = vpack.c.b16 %v415, %v413
    %480 = vmatprep.subr.bf16.mxu0 %v417
    %481 = vmatpush1.bf16.msra.mxu0 %v416
    %482 = vmatprep.subr.bf16.mxu0 %v419
    %483 = vmatpush1.bf16.msra.mxu0 %v418
    %484 = vmatprep.subr.bf16.mxu0 %v421
    %485 = vmatpush1.bf16.msra.mxu0 %v420
    %486 = vmatprep.subr.bf16.mxu0 %v423
    %487 = vmatpush1.bf16.msra.mxu0 %v422
    %488 = vmatprep.subr.bf16.mxu0 %v425
    %489 = vmatpush1.bf16.msra.mxu0 %v424
    %490 = vmatprep.subr.bf16.mxu0 %v427
    %491 = vmatpush1.bf16.msra.mxu0 %v426
    %492 = vmatprep.subr.bf16.mxu0 %v429
    %493 = vmatpush1.bf16.msra.mxu0 %v428
    %494 = vmatprep.subr.bf16.mxu0 %v431
    %495 = vmatpush1.bf16.msra.mxu0 %v430
    %496 = vmatprep.subr.bf16.mxu0 %v433
    %497 = vmatpush1.bf16.msra.mxu0 %v432
    %498 = vmatprep.subr.bf16.mxu0 %v435
    %499 = vmatpush1.bf16.msra.mxu0 %v434
    %500 = vmatprep.subr.bf16.mxu0 %v437
    %501 = vmatpush1.bf16.msra.mxu0 %v436
    %502 = vmatprep.subr.bf16.mxu0 %v439
    %503 = vmatpush1.bf16.msra.mxu0 %v438
    %504 = vmatprep.subr.bf16.mxu0 %v441
    %505 = vmatpush1.bf16.msra.mxu0 %v440
    %506 = vmatprep.subr.bf16.mxu0 %v443
    %507 = vmatpush1.bf16.msra.mxu0 %v442
    %508 = vmatprep.subr.bf16.mxu0 %v445
    %509 = vmatpush1.bf16.msra.mxu0 %v444
    %510 = vmatprep.subr.bf16.mxu0 %v447
    %511 = vmatpush1.bf16.msra.mxu0 %v446
    %512 = vmatprep.mubr.bf16.mxu0 %v261
    %513 = vmatmul.mubr.bf16.gmra.mrb[0].mxu0 %v260
    %v514 = vpop.f32.mrb[0].mxu0
    %v515 = vadd.f32 %v313, %v514
    %v516 = vpop.f32.mrb[0].mxu0
    %v517 = vadd.f32 %v317, %v516
    %v518 = vpop.f32.mrb[0].mxu0
    %v519 = vadd.f32 %v313, %v518
    %v520 = vpop.f32.mrb[0].mxu0
    %v521 = vadd.f32 %v317, %v520
    %522 = vmatprep.mubr.bf16.mxu0 %v263
    %523 = vmatmul.mubr.bf16.gmra.mrb[0].mxu0 %v262
    %v524 = vpop.f32.mrb[0].mxu0
    %v525 = vadd.f32 %v313, %v524
    %v526 = vpop.f32.mrb[0].mxu0
    %v527 = vadd.f32 %v317, %v526
    %v528 = vpop.f32.mrb[0].mxu0
    %v529 = vadd.f32 %v313, %v528
    %v530 = vpop.f32.mrb[0].mxu0
    %v531 = vadd.f32 %v317, %v530
    %532 = vmatprep.mubr.bf16.mxu0 %v265
    %533 = vmatmul.mubr.bf16.gmra.mrb[0].mxu0 %v264
    %v534 = vpop.f32.mrb[0].mxu0
    %v535 = vadd.f32 %v313, %v534
    %v536 = vpop.f32.mrb[0].mxu0
    %v537 = vadd.f32 %v317, %v536
    %v538 = vpop.f32.mrb[0].mxu0
    %v539 = vadd.f32 %v313, %v538
    %v540 = vpop.f32.mrb[0].mxu0
    %v541 = vadd.f32 %v317, %v540
    %542 = vmatprep.mubr.bf16.mxu0 %v267
    %543 = vmatmul.mubr.bf16.gmra.mrb[0].mxu0 %v266
    %v544 = vpop.f32.mrb[0].mxu0
    %v545 = vadd.f32 %v313, %v544
    %v546 = vpop.f32.mrb[0].mxu0
    %v547 = vadd.f32 %v317, %v546
    %v548 = vpop.f32.mrb[0].mxu0
    %v549 = vadd.f32 %v313, %v548
    %v550 = vpop.f32.mrb[0].mxu0
    %v551 = vadd.f32 %v317, %v550
    %552 = vmatprep.mubr.bf16.mxu0 %v269
    %553 = vmatmul.mubr.bf16.gmra.mrb[0].mxu0 %v268
    %v554 = vpop.f32.mrb[0].mxu0
    %v555 = vadd.f32 %v313, %v554
    %v556 = vpop.f32.mrb[0].mxu0
    %v557 = vadd.f32 %v317, %v556
    %v558 = vpop.f32.mrb[0].mxu0
    %v559 = vadd.f32 %v313, %v558
    %v560 = vpop.f32.mrb[0].mxu0
    %v561 = vadd.f32 %v317, %v560
    %562 = vmatprep.mubr.bf16.mxu0 %v271
    %563 = vmatmul.mubr.bf16.gmra.mrb[0].mxu0 %v270
    %v564 = vpop.f32.mrb[0].mxu0
    %v565 = vadd.f32 %v313, %v564
    %v566 = vpop.f32.mrb[0].mxu0
    %v567 = vadd.f32 %v317, %v566
    %v568 = vpop.f32.mrb[0].mxu0
    %v569 = vadd.f32 %v313, %v568
    %v570 = vpop.f32.mrb[0].mxu0
    %v571 = vadd.f32 %v317, %v570
    %572 = vmatprep.mubr.bf16.mxu0 %v273
    %573 = vmatmul.mubr.bf16.gmra.mrb[0].mxu0 %v272
    %v574 = vpop.f32.mrb[0].mxu0
    %v575 = vadd.f32 %v313, %v574
    %v576 = vpop.f32.mrb[0].mxu0
    %v577 = vadd.f32 %v317, %v576
    %v578 = vpop.f32.mrb[0].mxu0
    %v579 = vadd.f32 %v313, %v578
    %v580 = vpop.f32.mrb[0].mxu0
    %v581 = vadd.f32 %v317, %v580
    %582 = vmatprep.mubr.bf16.mxu0 %v275
    %583 = vmatmul.mubr.bf16.gmra.mrb[0].mxu0 %v274
    %v584 = vpop.f32.mrb[0].mxu0
    %v585 = vadd.f32 %v313, %v584
    %v586 = vpop.f32.mrb[0].mxu0
    %v587 = vadd.f32 %v317, %v586
    %v588 = vpop.f32.mrb[0].mxu0
    %v589 = vadd.f32 %v313, %v588
    %v590 = vpop.f32.mrb[0].mxu0
    %v591 = vadd.f32 %v317, %v590
    %592 = vdwg.mxu0
    %v593 = vmax.f32 %v515, 0.0
    %v594 = vmax.f32 %v517, 0.0
    %v595 = vmax.f32 %v519, 0.0
    %v596 = vmax.f32 %v521, 0.0
    %v597 = vmax.f32 %v525, 0.0
    %v598 = vmax.f32 %v527, 0.0
    %v599 = vmax.f32 %v529, 0.0
    %v600 = vmax.f32 %v531, 0.0
    %v601 = vmax.f32 %v535, 0.0
    %v602 = vmax.f32 %v537, 0.0
    %v603 = vmax.f32 %v539, 0.0
    %v604 = vmax.f32 %v541, 0.0
    %v605 = vmax.f32 %v545, 0.0
    %v606 = vmax.f32 %v547, 0.0
    %v607 = vmax.f32 %v549, 0.0
    %v608 = vmax.f32 %v551, 0.0
    %v609 = vmax.f32 %v555, 0.0
    %v610 = vmax.f32 %v557, 0.0
    %v611 = vmax.f32 %v559, 0.0
    %v612 = vmax.f32 %v561, 0.0
    %v613 = vmax.f32 %v565, 0.0
    %v614 = vmax.f32 %v567, 0.0
    %v615 = vmax.f32 %v569, 0.0
    %v616 = vmax.f32 %v571, 0.0
    %v617 = vmax.f32 %v575, 0.0
    %v618 = vmax.f32 %v577, 0.0
    %v619 = vmax.f32 %v579, 0.0
    %v620 = vmax.f32 %v581, 0.0
    %v621 = vmax.f32 %v585, 0.0
    %v622 = vmax.f32 %v587, 0.0
    %v623 = vmax.f32 %v589, 0.0
    %v624 = vmax.f32 %v591, 0.0
    %v625 = vld [vmem:[%s5] sm:$0x3]
    %v627 = vlaneseq
    %v628 = vshrl.u32 %v627, 7
    %v629 = vsub.s32 0, %v628
    %v630 = vrot.slane %v625, %v629
    %v631 = vlaneseq
    %v632 = vshrl.u32 %v631, 7
    %v633 = vsub.s32 1, %v632
    %v634 = vrot.slane %v625, %v633
    %v637 = vmul.f32 %v593, %v630
    %v638 = vmul.f32 %v594, %v634
    %v639 = vmul.f32 %v595, %v630
    %v640 = vmul.f32 %v596, %v634
    %v641 = vmul.f32 %v597, %v630
    %v642 = vmul.f32 %v598, %v634
    %v643 = vmul.f32 %v599, %v630
    %v644 = vmul.f32 %v600, %v634
    %v645 = vmul.f32 %v601, %v630
    %v646 = vmul.f32 %v602, %v634
    %v647 = vmul.f32 %v603, %v630
    %v648 = vmul.f32 %v604, %v634
    %v649 = vmul.f32 %v605, %v630
    %v650 = vmul.f32 %v606, %v634
    %v651 = vmul.f32 %v607, %v630
    %v652 = vmul.f32 %v608, %v634
    %v653 = vmul.f32 %v609, %v630
    %v654 = vmul.f32 %v610, %v634
    %v655 = vmul.f32 %v611, %v630
    %v656 = vmul.f32 %v612, %v634
    %v657 = vmul.f32 %v613, %v630
    %v658 = vmul.f32 %v614, %v634
    %v659 = vmul.f32 %v615, %v630
    %v660 = vmul.f32 %v616, %v634
    %v661 = vmul.f32 %v617, %v630
    %v662 = vmul.f32 %v618, %v634
    %v663 = vmul.f32 %v619, %v630
    %v664 = vmul.f32 %v620, %v634
    %v665 = vmul.f32 %v621, %v630
    %v666 = vmul.f32 %v622, %v634
    %v667 = vmul.f32 %v623, %v630
    %v668 = vmul.f32 %v624, %v634
    %v669 = vadd.f32 %v637, %v638
    %670 = vadd.xlane.f32.xlu0 %v669
    %v671 = vpop.xlane.xlu0 %670
    %v672 = vadd.f32 %v639, %v640
    %673 = vadd.xlane.f32.xlu0 %v672
    %v674 = vpop.xlane.xlu0 %673
    %v675 = vadd.f32 %v641, %v642
    %676 = vadd.xlane.f32.xlu0 %v675
    %v677 = vpop.xlane.xlu0 %676
    %v678 = vadd.f32 %v643, %v644
    %679 = vadd.xlane.f32.xlu0 %v678
    %v680 = vpop.xlane.xlu0 %679
    %v681 = vadd.f32 %v645, %v646
    %682 = vadd.xlane.f32.xlu0 %v681
    %v683 = vpop.xlane.xlu0 %682
    %v684 = vadd.f32 %v647, %v648
    %685 = vadd.xlane.f32.xlu0 %v684
    %v686 = vpop.xlane.xlu0 %685
    %v687 = vadd.f32 %v649, %v650
    %688 = vadd.xlane.f32.xlu0 %v687
    %v689 = vpop.xlane.xlu0 %688
    %v690 = vadd.f32 %v651, %v652
    %691 = vadd.xlane.f32.xlu0 %v690
    %v692 = vpop.xlane.xlu0 %691
    %v693 = vadd.f32 %v653, %v654
    %694 = vadd.xlane.f32.xlu0 %v693
    %v695 = vpop.xlane.xlu0 %694
    %v696 = vadd.f32 %v655, %v656
    %697 = vadd.xlane.f32.xlu0 %v696
    %v698 = vpop.xlane.xlu0 %697
    %v699 = vadd.f32 %v657, %v658
    %700 = vadd.xlane.f32.xlu0 %v699
    %v701 = vpop.xlane.xlu0 %700
    %v702 = vadd.f32 %v659, %v660
    %703 = vadd.xlane.f32.xlu0 %v702
    %v704 = vpop.xlane.xlu0 %703
    %v705 = vadd.f32 %v661, %v662
    %706 = vadd.xlane.f32.xlu0 %v705
    %v707 = vpop.xlane.xlu0 %706
    %v708 = vadd.f32 %v663, %v664
    %709 = vadd.xlane.f32.xlu0 %v708
    %v710 = vpop.xlane.xlu0 %709
    %v711 = vadd.f32 %v665, %v666
    %712 = vadd.xlane.f32.xlu0 %v711
    %v713 = vpop.xlane.xlu0 %712
    %v714 = vadd.f32 %v667, %v668
    %715 = vadd.xlane.f32.xlu0 %v714
    %v716 = vpop.xlane.xlu0 %715
    %s717 = sld [smem:[#allocation2]]
    %v718 = vstv %s717
    %v719 = vadd.f32 %v671, %v718
    %v720 = vadd.f32 %v674, %v718
    %v721 = vadd.f32 %v677, %v718
    %v722 = vadd.f32 %v680, %v718
    %v723 = vadd.f32 %v683, %v718
    %v724 = vadd.f32 %v686, %v718
    %v725 = vadd.f32 %v689, %v718
    %v726 = vadd.f32 %v692, %v718
    %v727 = vadd.f32 %v695, %v718
    %v728 = vadd.f32 %v698, %v718
    %v729 = vadd.f32 %v701, %v718
    %v730 = vadd.f32 %v704, %v718
    %v731 = vadd.f32 %v707, %v718
    %v732 = vadd.f32 %v710, %v718
    %v733 = vadd.f32 %v713, %v718
    %v734 = vadd.f32 %v716, %v718
    %v751 = vlaneseq
    %v752 = vand.u32 %v751, 127
    %v753 = vlaneseq
    %v754 = vshrl.u32 %v753, 7
    %v755 = vsub.s32 %v752, %v754
    %v756 = vrot.slane %v719, %v755
    %v757 = vadd.s32 %v752, 4294967288
    %v758 = vlaneseq
    %v759 = vshrl.u32 %v758, 7
    %v760 = vsub.s32 %v757, %v759
    %v761 = vrot.slane %v720, %v760
    %vm762 = vcmask 130112
    %v763 = vsel %vm762, %v761, %v756
    %v764 = vadd.s32 %v752, 4294967280
    %v765 = vlaneseq
    %v766 = vshrl.u32 %v765, 7
    %v767 = vsub.s32 %v764, %v766
    %v768 = vrot.slane %v721, %v767
    %vm769 = vcmask 195712
    %v770 = vsel %vm769, %v768, %v763
    %v771 = vadd.s32 %v752, 4294967272
    %v772 = vlaneseq
    %v773 = vshrl.u32 %v772, 7
    %v774 = vsub.s32 %v771, %v773
    %v775 = vrot.slane %v722, %v774
    %vm776 = vcmask 261312
    %v777 = vsel %vm776, %v775, %v770
    %v778 = vadd.s32 %v752, 4294967264
    %v779 = vlaneseq
    %v780 = vshrl.u32 %v779, 7
    %v781 = vsub.s32 %v778, %v780
    %v782 = vrot.slane %v723, %v781
    %vm783 = vcmask 326912
    %v784 = vsel %vm783, %v782, %v777
    %v785 = vadd.s32 %v752, 4294967256
    %v786 = vlaneseq
    %v787 = vshrl.u32 %v786, 7
    %v788 = vsub.s32 %v785, %v787
    %v789 = vrot.slane %v724, %v788
    %vm790 = vcmask 392512
    %v791 = vsel %vm790, %v789, %v784
    %v792 = vadd.s32 %v752, 4294967248
    %v793 = vlaneseq
    %v794 = vshrl.u32 %v793, 7
    %v795 = vsub.s32 %v792, %v794
    %v796 = vrot.slane %v725, %v795
    %vm797 = vcmask 458112
    %v798 = vsel %vm797, %v796, %v791
    %v799 = vadd.s32 %v752, 4294967240
    %v800 = vlaneseq
    %v801 = vshrl.u32 %v800, 7
    %v802 = vsub.s32 %v799, %v801
    %v803 = vrot.slane %v726, %v802
    %vm804 = vcmask 523712
    %v805 = vsel %vm804, %v803, %v798
    %v806 = vadd.s32 %v752, 4294967232
    %v807 = vlaneseq
    %v808 = vshrl.u32 %v807, 7
    %v809 = vsub.s32 %v806, %v808
    %v810 = vrot.slane %v727, %v809
    %vm811 = vcmask 589312
    %v812 = vsel %vm811, %v810, %v805
    %v813 = vadd.s32 %v752, 4294967224
    %v814 = vlaneseq
    %v815 = vshrl.u32 %v814, 7
    %v816 = vsub.s32 %v813, %v815
    %v817 = vrot.slane %v728, %v816
    %vm818 = vcmask 654912
    %v819 = vsel %vm818, %v817, %v812
    %v820 = vadd.s32 %v752, 4294967216
    %v821 = vlaneseq
    %v822 = vshrl.u32 %v821, 7
    %v823 = vsub.s32 %v820, %v822
    %v824 = vrot.slane %v729, %v823
    %vm825 = vcmask 720512
    %v826 = vsel %vm825, %v824, %v819
    %v827 = vadd.s32 %v752, 4294967208
    %v828 = vlaneseq
    %v829 = vshrl.u32 %v828, 7
    %v830 = vsub.s32 %v827, %v829
    %v831 = vrot.slane %v730, %v830
    %vm832 = vcmask 786112
    %v833 = vsel %vm832, %v831, %v826
    %v834 = vadd.s32 %v752, 4294967200
    %v835 = vlaneseq
    %v836 = vshrl.u32 %v835, 7
    %v837 = vsub.s32 %v834, %v836
    %v838 = vrot.slane %v731, %v837
    %vm839 = vcmask 851712
    %v840 = vsel %vm839, %v838, %v833
    %v841 = vadd.s32 %v752, 4294967192
    %v842 = vlaneseq
    %v843 = vshrl.u32 %v842, 7
    %v844 = vsub.s32 %v841, %v843
    %v845 = vrot.slane %v732, %v844
    %vm846 = vcmask 917312
    %v847 = vsel %vm846, %v845, %v840
    %v848 = vadd.s32 %v752, 4294967184
    %v849 = vlaneseq
    %v850 = vshrl.u32 %v849, 7
    %v851 = vsub.s32 %v848, %v850
    %v852 = vrot.slane %v733, %v851
    %vm853 = vcmask 982912
    %v854 = vsel %vm853, %v852, %v847
    %v855 = vadd.s32 %v752, 4294967176
    %v856 = vlaneseq
    %v857 = vshrl.u32 %v856, 7
    %v858 = vsub.s32 %v855, %v857
    %v859 = vrot.slane %v734, %v858
    %vm860 = vcmask 1048512
    %v861 = vsel %vm860, %v859, %v854
    %863 = vst [vmem:[%s7] sm:$0x1] %v861
    // Predicated region
    $region34: #{value_network_forward.1} parent=1 // pred_check
      _
    $region35: #{value_network_forward.1} parent=1 // pred_check_branch
      %865 = sbr.rel (0) target = $region37
    $region36: #{value_network_forward.1} parent=1 // pred_region
      _
    $region37: #{value_network_forward.1} parent=1 // pred_fallthru
      _
    // Predicated region
    $region38: #{value_network_forward.1} parent=1 // pred_check
      _
    $region39: #{value_network_forward.1} parent=1 // pred_check_branch
      %867 = sbr.rel (0) target = $region41
    $region40: #{value_network_forward.1} parent=1 // pred_region
      _
    $region41: #{value_network_forward.1} parent=1 // pred_fallthru
      _
    %868 = vsyncpa [#allocation4], 1

</llo_original>
